<compile_context>
chip_gen: v6e
topology: v6e:2x2x1
jax: 0.10.0
libtpu: 0.0.40
codegen_flags: <defaults>
</compile_context>

<pallas_src>
import functools

import jax
import jax.numpy as jnp
from jax.experimental import pallas as pl
from jax.experimental.pallas import tpu as pltpu


# ---------------------------------------------------------------------------
# Helpers: device caps, block sizing
# ---------------------------------------------------------------------------

def _cdiv(a, b):
    return (a + b - 1) // b


def _round_up(a, m):
    return ((a + m - 1) // m) * m


@functools.lru_cache(maxsize=1)
def _device_caps():
    """(tensorcores_per_chip, default_max_block_bytes, bf16_native_vpu_eup)."""
    kind = ""
    try:
        kind = (getattr(jax.devices()[0], "device_kind", "") or "").lower()
    except Exception:
        pass
    if "v7" in kind:   # 2 TCs, 3.2 TB/s HBM, 64 MiB VMEM -> big blocks, even step counts
        return 2, 8 * 1024 * 1024, True
    if "v6" in kind:   # 1 TC, bf16 VPU/EUP
        return 1, 4 * 1024 * 1024, True
    if "v5" in kind:   # 1 TC, no bf16 VPU/EUP, 16 MiB scoped-VMEM default
        return 1, 2 * 1024 * 1024, False
    return 1, 2 * 1024 * 1024, False


def _sublane_multiple(itemsize):
    # Sub-32-bit dtypes pack along sublanes; keep blocks aligned to the packed tile.
    return {4: 8, 2: 16, 1: 32}.get(int(itemsize), 8)


def _vmem_limit_bytes(block_bytes, n_block_operands):
    # Double-buffered block-sized operands + headroom for compiler scratch.
    return int(2 * n_block_operands * block_bytes + 8 * 1024 * 1024)


def _choose_units_per_block(num_units, bytes_per_unit, align, max_block_bytes, cores):
    """Units (rows / 1024-elem chunks) per block.

    Multiple of `align` (or the full extent), capped at ~max_block_bytes.  On
    multi-TensorCore chips (v7x) aim for an even number of grid steps with >= 4
    steps per core while keeping blocks >= ~512 KiB; single-TC chips keep the
    single biggest block (their grid is a serial loop, splitting is pure loss).
    """
    if num_units <= align:
        return num_units                                   # full-extent block
    cap = max(align, max_block_bytes // bytes_per_unit)
    upb = min(_round_up(num_units, align), _round_up(cap, align))
    if cores > 1:
        min_units = max(align, _round_up(_cdiv(512 * 1024, bytes_per_unit), align))
        for steps in (4 * cores, 2 * cores, cores):
            cand = _round_up(_cdiv(num_units, steps), align)
            if cand >= min_units:
                upb = min(upb, cand)
                break
        steps = _cdiv(num_units, upb)
        if steps > 1 and steps % cores:                    # avoid odd step counts
            steps = _round_up(steps, cores)
            upb = max(align, _round_up(_cdiv(num_units, steps), align))
    if upb >= num_units:
        return num_units
    return upb


# ---------------------------------------------------------------------------
# Swish (x * sigmoid(x)) elementwise kernel
# ---------------------------------------------------------------------------

def _swish_kernel(x_ref, o_ref, *, compute_dtype):
    xf = x_ref[...].astype(compute_dtype)
    # sigmoid(x) = 0.5 * tanh(x/2) + 0.5 -> single EUP tanh, no VALU divide,
    # no NaN at -inf.
    sig = 0.5 * jnp.tanh(0.5 * xf) + 0.5
    o_ref[...] = (xf * sig).astype(o_ref.dtype)


def swish(x, *, max_block_bytes=None, min_pallas_bytes=64 * 1024):
    """Elementwise swish/SiLU on an arbitrarily shaped array (e.g. NCHW activations)."""
    dtype = x.dtype
    n = int(x.size)
    itemsize = int(jnp.dtype(dtype).itemsize)
    cores, default_block, bf16_native = _device_caps()
    if max_block_bytes is None:
        max_block_bytes = default_block

    lane_friendly = (n % 128 == 0)
    # Small-input fallback: launch + grid overhead dominates tiny activations.
    if n == 0 or n * itemsize < min_pallas_bytes or (not lane_friendly and n < 1024):
        xf = x.astype(jnp.float32)
        return (xf * jax.nn.sigmoid(xf)).astype(dtype)

    if dtype == jnp.bfloat16 and bf16_native:
        compute_dtype = jnp.bfloat16      # v6e/v7x: bf16 VPU/EUP, halves vreg pressure
    else:
        compute_dtype = jnp.float32
    kernel = functools.partial(_swish_kernel, compute_dtype=compute_dtype)

    if lane_friendly:
        # 2-D lane-dense path: free reshape, no pad, no slice.
        cols = 128
        for c in (1024, 512, 256):
            if n % c == 0:
                cols = c
                break
        rows = n // cols
        align = _sublane_multiple(itemsize)
        block_rows = _choose_units_per_block(rows, cols * itemsize, align,
                                             max_block_bytes, cores)
        block_bytes = block_rows * cols * itemsize
        x2 = jnp.reshape(x, (rows, cols))
        out = pl.pallas_call(
            kernel,
            out_shape=jax.ShapeDtypeStruct((rows, cols), dtype),
            grid_spec=pltpu.PrefetchScalarGridSpec(
                num_scalar_prefetch=0,
                grid=(_cdiv(rows, block_rows),),
                in_specs=[pl.BlockSpec((block_rows, cols), lambda i: (i, 0))],
                out_specs=pl.BlockSpec((block_rows, cols), lambda i: (i, 0)),
            ),
            compiler_params=pltpu.CompilerParams(
                dimension_semantics=("parallel",),
                vmem_limit_bytes=_vmem_limit_bytes(block_bytes, 2),
            ),
        )(x2)
        return jnp.reshape(out, x.shape)

    # Ragged path: block the flat array directly with a 1-D BlockSpec; Pallas masks
    # the ragged final block.  No jnp.pad / no [:n] slice -> no extra HBM passes.
    flat = jnp.reshape(x, (n,))
    units = n // 1024                                    # full 1024-element chunks
    upb = _choose_units_per_block(units, 1024 * itemsize, 1, max_block_bytes, cores)
    block_elems = max(1024, upb * 1024)                  # multiple of 128, <= n
    block_bytes = block_elems * itemsize
    out = pl.pallas_call(
        kernel,
        out_shape=jax.ShapeDtypeStruct((n,), dtype),
        grid_spec=pltpu.PrefetchScalarGridSpec(
            num_scalar_prefetch=0,
            grid=(_cdiv(n, block_elems),),
            in_specs=[pl.BlockSpec((block_elems,), lambda i: (i,))],
            out_specs=pl.BlockSpec((block_elems,), lambda i: (i,)),
        ),
        compiler_params=pltpu.CompilerParams(
            dimension_semantics=("parallel",),
            vmem_limit_bytes=_vmem_limit_bytes(block_bytes, 2),
        ),
    )(flat)
    return jnp.reshape(out, x.shape)


# ---------------------------------------------------------------------------
# Global pooling kernel: Adaptive{Avg,Max,Concat}Pool2d((1,1)) of BaseModel
# ---------------------------------------------------------------------------

def _global_pool_kernel(x_ref, avg_ref, max_ref):
    xf = x_ref[...].astype(jnp.float32)
    avg_ref[...] = jnp.mean(xf, axis=-1, keepdims=True).astype(avg_ref.dtype)
    max_ref[...] = jnp.max(x_ref[...], axis=-1, keepdims=True)


def global_pool_nchw(x, pooling="avg", *, max_block_bytes=None,
                     min_pallas_bytes=64 * 1024):
    """BaseModel's pool stage: NCHW -> (N, C) ('avg'/'max') or (N, 2C) ('concat')."""
    if pooling not in ("avg", "max", "concat"):
        raise ValueError(f"unknown pooling: {pooling!r}")
    N, C, H, W = x.shape
    dtype = x.dtype
    R, S = N * C, H * W
    itemsize = int(jnp.dtype(dtype).itemsize)
    cores, default_block, _ = _device_caps()
    if max_block_bytes is None:
        max_block_bytes = default_block

    x2 = jnp.reshape(x, (R, S))                          # free reshape (contiguous)
    if R == 0 or S == 0 or R * S * itemsize < min_pallas_bytes:
        avg = jnp.mean(x2.astype(jnp.float32), axis=-1).astype(dtype)
        mx = jnp.max(x2, axis=-1)
    else:
        align = _sublane_multiple(itemsize)
        block_rows = _choose_units_per_block(R, S * itemsize, align,
                                             max_block_bytes, cores)
        block_bytes = block_rows * S * itemsize
        # Block last dim == full H*W (allowed even when not a multiple of 128);
        # grid only over rows of (N*C, H*W), ragged final row-block masked by Pallas.
        avg, mx = pl.pallas_call(
            _global_pool_kernel,
            out_shape=(jax.ShapeDtypeStruct((R, 1), dtype),
                       jax.ShapeDtypeStruct((R, 1), dtype)),
            grid_spec=pltpu.PrefetchScalarGridSpec(
                num_scalar_prefetch=0,
                grid=(_cdiv(R, block_rows),),
                in_specs=[pl.BlockSpec((block_rows, S), lambda i: (i, 0))],
                out_specs=(pl.BlockSpec((block_rows, 1), lambda i: (i, 0)),
                           pl.BlockSpec((block_rows, 1), lambda i: (i, 0))),
            ),
            compiler_params=pltpu.CompilerParams(
                dimension_semantics=("parallel",),
                vmem_limit_bytes=_vmem_limit_bytes(block_bytes, 1),
            ),
        )(x2)

    avg = jnp.reshape(avg, (N, C))
    mx = jnp.reshape(mx, (N, C))
    if pooling == "avg":
        return avg
    if pooling == "max":
        return mx
    # 'concat' (AdaptiveConcatPool2d): [max, avg] along the channel dim.
    return jnp.concatenate([mx, avg], axis=1)


def base_model_forward(x, feature_extractor=None, predictor=None, pooling="avg",
                       **pool_kwargs):
    """BaseModel.forward: feature_extractor -> pool(1,1) -> flatten -> predictor."""
    # TODO(synk): feature_extractor / predictor are arbitrary injected nn.Modules in
    # the original BaseModel; identity is used when no callable is supplied.
    if feature_extractor is not None:
        x = feature_extractor(x)
    x = global_pool_nchw(x, pooling=pooling, **pool_kwargs)
    x = jnp.reshape(x, (x.shape[0], -1))                 # x.view(x.size(0), -1)
    if predictor is not None:
        x = predictor(x)
    return x


# ---------------------------------------------------------------------------
# Demo / self-test
# ---------------------------------------------------------------------------

if __name__ == "__main__":
    key = jax.random.PRNGKey(0)
    k1, k2, k3 = jax.random.split(key, 3)

    # Swish: lane-friendly NCHW activation (numel % 1024 == 0 -> 2-D path).
    x = jax.random.normal(k1, (2, 4, 16, 16), dtype=jnp.float32)
    y = jax.block_until_ready(swish(x, min_pallas_bytes=0))   # force the Pallas path
    y_ref = x * jax.nn.sigmoid(x)
    assert y.shape == x.shape and y.dtype == x.dtype
    assert jnp.allclose(y, y_ref, atol=1e-5, rtol=1e-5)

    # Swish: ragged size -> 1-D flat blocking, no pad / no slice.
    x2 = jax.random.normal(k2, (3, 5, 7, 11), dtype=jnp.float32)
    y2 = jax.block_until_ready(swish(x2, min_pallas_bytes=0))
    y2_ref = x2 * jax.nn.sigmoid(x2)
    assert y2.shape == x2.shape and y2.dtype == x2.dtype
    assert jnp.allclose(y2, y2_ref, atol=1e-5, rtol=1e-5)

    # Swish: bf16 (bf16 compute on v6e/v7x, f32 compute on v5e).
    xb = x.astype(jnp.bfloat16)
    yb = jax.block_until_ready(swish(xb, min_pallas_bytes=0))
    yb_ref = (x * jax.nn.sigmoid(x)).astype(jnp.bfloat16)
    assert yb.shape == xb.shape and yb.dtype == xb.dtype
    assert jnp.allclose(yb.astype(jnp.float32), yb_ref.astype(jnp.float32),
                        atol=5e-2, rtol=5e-2)

    # BaseModel forward: Pallas pooling (avg / max / concat) + flatten.
    feats = jax.random.normal(k3, (2, 4, 16, 16), dtype=jnp.float32)
    N, C, H, W = feats.shape
    ref_avg = jnp.mean(feats, axis=(2, 3))
    ref_max = jnp.max(feats, axis=(2, 3))
    checks = (("avg", ref_avg), ("max", ref_max),
              ("concat", jnp.concatenate([ref_max, ref_avg], axis=1)))
    for pooling, ref in checks:
        out = jax.block_until_ready(
            base_model_forward(feats, pooling=pooling, min_pallas_bytes=0))
        assert out.shape == (N, C * (2 if pooling == "concat" else 1))
        assert jnp.allclose(out, ref, atol=1e-5, rtol=1e-5)

    # End-to-end: Pallas swish standing in for the injected feature_extractor.
    out = jax.block_until_ready(
        base_model_forward(feats,
                           feature_extractor=lambda t: swish(t, min_pallas_bytes=0),
                           pooling="avg", min_pallas_bytes=0))
    ref = jnp.mean(feats * jax.nn.sigmoid(feats), axis=(2, 3))
    assert jnp.allclose(out, ref, atol=1e-5, rtol=1e-5)

    print("KERNEL_OK")
</pallas_src>

<mosaic_0001>
module attributes {stable_mosaic.version = 11 : i64} {
  func.func @_swish_kernel(%arg0: i32, %arg1: memref<2x1024xf32, #tpu.memory_space<vmem>>, %arg2: memref<2x1024xf32, #tpu.memory_space<vmem>>) attributes {dimension_semantics = [#tpu.dimension_semantics<parallel>], iteration_bounds = array<i64: 1>, scalar_prefetch = 0 : i64, scratch_operands = 0 : i64, tpu.core_type = #tpu.core_type<tc>, window_params = [{transform_indices = @transform_0, window_bounds = array<i64: 2, 1024>}, {transform_indices = @transform_1, window_bounds = array<i64: 2, 1024>}]} {
    %c0 = arith.constant 0 : index
    %c0_0 = arith.constant 0 : index
    %0 = vector.load %arg1[%c0, %c0_0] : memref<2x1024xf32, #tpu.memory_space<vmem>>, vector<2x1024xf32>
    %cst = arith.constant 5.000000e-01 : f32
    %1 = vector.broadcast %cst : f32 to vector<2x1024xf32>
    %2 = arith.mulf %1, %0 : vector<2x1024xf32>
    %3 = math.tanh %2 : vector<2x1024xf32>
    %cst_1 = arith.constant 5.000000e-01 : f32
    %4 = vector.broadcast %cst_1 : f32 to vector<2x1024xf32>
    %5 = arith.mulf %4, %3 : vector<2x1024xf32>
    %cst_2 = arith.constant 5.000000e-01 : f32
    %6 = vector.broadcast %cst_2 : f32 to vector<2x1024xf32>
    %7 = arith.addf %5, %6 : vector<2x1024xf32>
    %8 = arith.mulf %0, %7 : vector<2x1024xf32>
    %c0_3 = arith.constant 0 : index
    %c0_4 = arith.constant 0 : index
    %9 = vector.load %arg2[%c0_3, %c0_4] : memref<2x1024xf32, #tpu.memory_space<vmem>>, vector<2x1024xf32>
    tpu.vector_store %arg2[%c0_3, %c0_4], %8 {strides = array<i32>} : memref<2x1024xf32, #tpu.memory_space<vmem>>, vector<2x1024xf32>,
    return
  }
  func.func @transform_0(%arg0: i32) -> (i32, i32) {
    %c0_i32 = arith.constant 0 : i32
    %c0_i32_0 = arith.constant 0 : i32
    return %arg0, %c0_i32 : i32, i32
  }
  func.func @transform_1(%arg0: i32) -> (i32, i32) {
    %c0_i32 = arith.constant 0 : i32
    %c0_i32_0 = arith.constant 0 : i32
    return %arg0, %c0_i32 : i32, i32
  }
}

</mosaic_0001>

<llo_original>
// kernel: tpu_custom_call.1
$region0: #{tpu_custom_call.1}
  #allocation0 [shape = 'u32[]', space=smem, size = 0x4, offset = 0x4, fixed_abs, tag = 'smem constant byte address 0x4 - core index']
  #allocation1 [shape = 'u32[144,128]{1,0:T(1,128)}', space=vmem, size = 0x12000, scoped, tag = 'internal scratch']
  %s0 = inlined_call_operand.hbm [shape: f32[2,1024], index: 0, kind: input, shape index: {}]
  %s1 = inlined_call_operand.hbm [shape: f32[2,1024], index: 1, kind: output, shape index: {}]
  %s2 = sld [smem:[#allocation0]]
  $region18: #{tpu_custom_call.1} parent=0
    _
  %s4 = ssub.s32 1, %s2
  %s5 = scalar_select 0, %s4, %s2
  $region1: #{tpu_custom_call.1} parent=0
    #allocation2 [shape = 'u8[8192]{0}', space=vmem, size = 0x2000, scoped, tag = 'input window, operand 0, single buffered']
    #allocation3 [shape = 's32[1]{0}', space=sflag, size = 0x4, scoped, tag = 'scoped memory for tpu_custom_call.1']
    #allocation4 [shape = 's32[1]{0}', space=sflag, size = 0x4, scoped, tag = 'scoped memory for tpu_custom_call.1']
    #allocation5 [shape = 'u8[8192]{0}', space=vmem, size = 0x2000, scoped, tag = 'output window, operand 0, single buffered']
    %6 = vsyncpa [#allocation3], 0
    %7 = vsyncpa [#allocation4], 0
    // Predicated region
    $region2: #{tpu_custom_call.1} parent=1 // pred_check
      _
    $region3: #{tpu_custom_call.1} parent=1 // pred_check_branch
      %9 = sbr.rel (0) target = $region5
    $region4: #{tpu_custom_call.1} parent=1 // pred_region
      %s11 = ssub.s32 256, 256
      %12 = vsyncadd [#allocation3], %s11
      %s14 = sshll.u32 [#allocation2], 4
      %s15 = int_to_ptr.vmem [resolvable:$true] %s14
      %17 = dma.hbm_to_vmem [thread:$0]  %s0, 256, %s15, [#allocation3]
    $region5: #{tpu_custom_call.1} parent=1 // pred_fallthru
      _
    // Predicated region
    $region6: #{tpu_custom_call.1} parent=1 // pred_check
      _
    $region7: #{tpu_custom_call.1} parent=1 // pred_check_branch
      %19 = sbr.rel (0) target = $region9
    $region8: #{tpu_custom_call.1} parent=1 // pred_region
      %20 = dma.done [#allocation3], 256
    $region9: #{tpu_custom_call.1} parent=1 // pred_fallthru
      _
    %v21 = vld [vmem:[#allocation2] sm:$0xff]
    %v22 = vld [vmem:[#allocation2 + $0x8] sm:$0xff]
    %v23 = vmul.f32 %v21, 0.5
    %v24 = vmul.f32 %v22, 0.5
    %v25 = vtanh.pop %v23
    %v26 = vtanh.pop %v24
    %v27 = vmul.f32 %v25, 0.5
    %v28 = vmul.f32 %v26, 0.5
    %v29 = vadd.f32 %v27, 0.5
    %v30 = vadd.f32 %v28, 0.5
    %v31 = vmul.f32 %v21, %v29
    %v32 = vmul.f32 %v22, %v30
    %33 = vst [vmem:[#allocation5] sm:$0xff] %v31
    %34 = vst [vmem:[#allocation5 + $0x8] sm:$0xff] %v32
    // Predicated region
    $region10: #{tpu_custom_call.1} parent=1 // pred_check
      _
    $region11: #{tpu_custom_call.1} parent=1 // pred_check_branch
      %36 = sbr.rel (0) target = $region13
    $region12: #{tpu_custom_call.1} parent=1 // pred_region
      %s38 = ssub.s32 256, 256
      %39 = vsyncadd [#allocation4], %s38
      %s41 = sshll.u32 [#allocation5], 4
      %s42 = int_to_ptr.vmem [resolvable:$true] %s41
      %44 = dma.vmem_to_hbm [thread:$0]  %s42, 256, %s1, [#allocation4]
    $region13: #{tpu_custom_call.1} parent=1 // pred_fallthru
      _
    // Predicated region
    $region14: #{tpu_custom_call.1} parent=1 // pred_check
      _
    $region15: #{tpu_custom_call.1} parent=1 // pred_check_branch
      %46 = sbr.rel (0) target = $region17
    $region16: #{tpu_custom_call.1} parent=1 // pred_region
      %47 = dma.done [#allocation4], 256
    $region17: #{tpu_custom_call.1} parent=1 // pred_fallthru
      _
    %48 = vsyncpa [#allocation3], 1
    %49 = vsyncpa [#allocation4], 1

</llo_original>
